<compile_context>
chip_gen: v5e
topology: v5e:2x2
jax: 0.10.0
libtpu: 0.0.40
codegen_flags: <defaults>
</compile_context>

<pallas_src>
import jax
import jax.numpy as jnp
from jax.experimental import pallas as pl
from jax.experimental.pallas import tpu as pltpu


def _round_up(x, m):
    return ((x + m - 1) // m) * m


# ---------------------------------------------------------------------------
# Kernel
# ---------------------------------------------------------------------------
def _textcnn_kernel(emb_ref, weff_ref, aux_ref, out_ref, acc_ref):
    """Fused conv-bank + pool + ReLU + classifier + sigmoid.

    emb_ref : (bt, tk)     bf16  flattened token embeddings (K-tile)
    weff_ref: (tk, C_pad)  bf16  effective conv+avgpool weights (K-tile)
    aux_ref : (8, C_pad)   f32   row0=conv bias, row1=fc weight, row2=fc bias
    out_ref : (bt, C_pad)  bf16  sigmoid(logit) broadcast across lanes
    acc_ref : (bt, C_pad)  f32   VMEM accumulator across the K grid axis
    """
    k = pl.program_id(1)

    @pl.when(k == 0)
    def _():
        acc_ref[...] = jnp.zeros_like(acc_ref)

    # bf16 x bf16 MXU matmul with f32 accumulation.
    acc_ref[...] += jnp.dot(emb_ref[...], weff_ref[...],
                            preferred_element_type=jnp.float32)

    @pl.when(k == pl.num_programs(1) - 1)
    def _():
        # conv bias + ReLU in f32 (padded lanes have zero weight & bias -> stay 0).
        feat = jnp.maximum(acc_ref[...] + aux_ref[0:1, :], 0.0)
        # Fused classifier: VPU multiply + cross-lane (XLU) reduction.
        logit = jnp.sum(feat * aux_ref[1:2, :], axis=-1, keepdims=True)
        logit = logit + aux_ref[2:3, 0:1]                     # fc bias
        # TODO(synk): nn.Dropout is identity in eval mode; training dropout not implemented.
        out_ref[...] = jnp.broadcast_to(
            jax.nn.sigmoid(logit), out_ref.shape).astype(out_ref.dtype)


# ---------------------------------------------------------------------------
# One-time parameter re-layout (amortized out of the forward path)
# ---------------------------------------------------------------------------
def prepare_textcnn_params(params, kernel_sizes, num_channels, seq_len,
                           c_pad=128, compute_dtype=jnp.bfloat16):
    """Builds:
      table : (vocab, 2E)   bf16  pre-concatenated embedding + constant_embedding
      w_eff : (T*2E, c_pad) bf16  effective conv+avgpool weights (zero-padded lanes)
      aux   : (8, c_pad)    f32   conv bias / fc weight / fc bias rows
    """
    E = params["embedding"].shape[1]
    E2 = 2 * E
    T = seq_len
    c_total = sum(num_channels)
    assert c_total <= c_pad, "pad target must hold all conv channels"

    # One table -> one gather in the forward (no double gather + concat).
    table = jnp.concatenate(
        [params["embedding"], params["constant_embedding"]], axis=1)

    w_eff = jnp.zeros((T, E2, c_pad), jnp.float32)
    bias_row = jnp.zeros((c_pad,), jnp.float32)

    off = 0
    for w, b, k, c in zip(params["conv_w"], params["conv_b"],
                          kernel_sizes, num_channels):
        L = T - k + 1                                          # valid conv length
        wt = jnp.transpose(w, (2, 1, 0)).astype(jnp.float32)   # (k, 2E, C)
        block = jnp.zeros((T, E2, c), jnp.float32)
        for tau in range(k):
            # tap tau contributes to absolute positions tau .. tau+L-1,
            # each weighted 1/L by the average pool.
            block = block.at[tau:tau + L].add(wt[tau] / L)
        w_eff = w_eff.at[:, :, off:off + c].set(block)
        bias_row = bias_row.at[off:off + c].set(b.astype(jnp.float32))
        off += c

    fc_w = params["fc_w"].astype(jnp.float32).reshape(-1)      # (c_total,)
    fc_b = params["fc_b"].reshape(()).astype(jnp.float32)

    aux = jnp.zeros((8, c_pad), jnp.float32)
    aux = aux.at[0].set(bias_row)
    aux = aux.at[1, :c_total].set(fc_w)
    aux = aux.at[2].set(jnp.full((c_pad,), fc_b))

    return {
        "table": table.astype(compute_dtype),                  # (vocab, 2E) bf16
        "w_eff": w_eff.reshape(T * E2, c_pad).astype(compute_dtype),
        "aux": aux,                                            # f32 epilogue params
    }


# ---------------------------------------------------------------------------
# VMEM / tiling heuristics (generation aware)
# ---------------------------------------------------------------------------
def _vmem_limit_bytes():
    """~3/4 of physical VMEM: ~48 MiB on 64 MiB parts (v7x), ~96 MiB on
    128 MiB parts (v5e/v6e). Fallback assumes the smallest part (safe everywhere)."""
    try:
        cap = int(pltpu.get_tpu_info().vmem_capacity_bytes)
    except Exception:
        cap = 64 * 1024 * 1024
    return min(cap * 3 // 4, 96 * 1024 * 1024)


def _choose_k_tile(K, c_pad, itemsize, weff_budget):
    """Keep W_eff fully VMEM-resident when its (double-buffered) footprint fits;
    otherwise stream lane-aligned K blocks (needs K % 128 == 0)."""
    if 2 * K * c_pad * itemsize <= weff_budget or K % 128 != 0:
        return K
    tk_max = max(128, (weff_budget // (2 * c_pad * itemsize)) // 128 * 128)
    for tk in range(min(K, tk_max), 0, -128):
        if K % tk == 0:
            return tk
    return K


def _choose_batch_tile(B, per_row_bytes, fixed_bytes, budget, max_tile=1024):
    """Rows per grid step, accounting for every VMEM consumer (double-buffered
    emb + out tiles, f32 accumulator) on top of the fixed W_eff/aux buffers.
    16-row granularity (bf16 sublane packing); 256-row MXU M-granularity once
    the batch is big enough that batch padding (wasted HBM traffic) is
    negligible; prefers >= 2 grid steps (megacore / v7x dual TensorCores)."""
    avail = max(budget - fixed_bytes, 16 * per_row_bytes)
    bt_cap = min(max_tile, avail // per_row_bytes)
    g = 256 if (B >= 1024 and bt_cap >= 256) else 16
    bt_cap = max(g, bt_cap // g * g)
    n_tiles = max(pl.cdiv(B, bt_cap), 2 if B >= 2 * g else 1)
    return min(bt_cap, _round_up(pl.cdiv(B, n_tiles), g))


# ---------------------------------------------------------------------------
# Forward
# ---------------------------------------------------------------------------
def textcnn_forward(tokens, prepared):
    table = prepared["table"]                                  # (vocab, 2E) bf16
    w_eff = prepared["w_eff"]                                  # (K, C_pad)  bf16
    aux = prepared["aux"]                                      # (8, C_pad)  f32

    B, T = tokens.shape
    E2 = table.shape[1]
    K, C_pad = w_eff.shape
    assert K == T * E2

    emb_is = jnp.dtype(table.dtype).itemsize
    out_dtype = jnp.bfloat16
    out_is = jnp.dtype(out_dtype).itemsize

    vmem_limit = _vmem_limit_bytes()
    budget = vmem_limit * 3 // 4                               # explicit-buffer budget

    tk = _choose_k_tile(K, C_pad, emb_is, weff_budget=budget // 3)
    nk = K // tk

    fixed = 2 * tk * C_pad * emb_is + 2 * 8 * C_pad * 4        # W_eff + aux buffers
    per_row = 2 * tk * emb_is + 2 * C_pad * out_is + C_pad * 4  # emb + out + acc
    bt = _choose_batch_tile(B, per_row, fixed, budget)
    B_pad = _round_up(B, bt)

    # Pad the (tiny) token ids, NOT the (B, K) embedding tensor: the single
    # gather from the pre-concatenated bf16 table then writes straight into the
    # padded buffer (no extra full-tensor HBM copy, no concat, no astype).
    if B_pad != B:
        tokens = jnp.pad(tokens, ((0, B_pad - B), (0, 0)))
    emb_flat = table[tokens].reshape(B_pad, K)
    # TODO(synk): fuse this gather into the kernel (scalar-prefetched token ids
    # + in-kernel VMEM gather) so emb never round-trips through HBM at all.

    grid = (B_pad // bt, nk)
    out = pl.pallas_call(
        _textcnn_kernel,
        out_shape=jax.ShapeDtypeStruct((B_pad, C_pad), out_dtype),
        grid_spec=pltpu.PrefetchScalarGridSpec(
            num_scalar_prefetch=0,
            grid=grid,
            in_specs=[
                pl.BlockSpec((bt, tk), lambda i, k: (i, k)),       # emb: batch x K tiles
                pl.BlockSpec((tk, C_pad), lambda i, k: (k, 0)),    # W_eff: K tiles
                pl.BlockSpec((8, C_pad), lambda i, k: (0, 0)),     # aux: VMEM-resident
            ],
            out_specs=pl.BlockSpec((bt, C_pad), lambda i, k: (i, 0)),
            scratch_shapes=[pltpu.VMEM((bt, C_pad), jnp.float32)],  # f32 accumulator
        ),
        compiler_params=pltpu.CompilerParams(
            dimension_semantics=("parallel", "arbitrary"),
            vmem_limit_bytes=vmem_limit,
        ),
    )(emb_flat, w_eff, aux)

    return out[:B, 0:1].astype(jnp.float32)                    # (B, 1)


# ---------------------------------------------------------------------------
# Parameter init (matches the PyTorch module)
# ---------------------------------------------------------------------------
def init_params(key, vocab, emb_dim, kernel_sizes, num_channels):
    keys = jax.random.split(key, 4 + len(kernel_sizes))

    def xavier(k, shape, fan_in, fan_out):
        limit = (6.0 / (fan_in + fan_out)) ** 0.5
        return jax.random.uniform(k, shape, jnp.float32, -limit, limit)

    params = {
        "embedding": jax.random.normal(keys[0], (vocab, emb_dim), jnp.float32),
        "constant_embedding": jax.random.normal(keys[1], (vocab, emb_dim),
                                                jnp.float32),
    }
    conv_w, conv_b = [], []
    for i, (c, k) in enumerate(zip(num_channels, kernel_sizes)):
        # PyTorch Conv1d weight layout: (C_out, C_in=2E, k); xavier_uniform_.
        conv_w.append(xavier(keys[2 + i], (c, 2 * emb_dim, k),
                             2 * emb_dim * k, c * k))
        conv_b.append(jnp.zeros((c,), jnp.float32))
    params["conv_w"], params["conv_b"] = conv_w, conv_b

    total = sum(num_channels)
    params["fc_w"] = xavier(keys[-2], (1, total), total, 1)    # Linear(sum(C), 1)
    params["fc_b"] = jnp.zeros((1,), jnp.float32)
    return params


if __name__ == "__main__":
    key = jax.random.PRNGKey(0)
    kp, kt = jax.random.split(key)

    vocab, emb_dim, B, T = 20, 8, 2, 16
    kernel_sizes = (3, 4, 5)
    num_channels = (8, 8, 8)

    params = init_params(kp, vocab, emb_dim, kernel_sizes, num_channels)
    tokens = jax.random.randint(kt, (B, T), 0, vocab)

    # One-time parameter re-layout (hoisted out of the forward path).
    prepared = prepare_textcnn_params(params, kernel_sizes, num_channels, T)

    fwd = jax.jit(textcnn_forward)
    out = jax.block_until_ready(fwd(tokens, prepared))

    # Pure-JAX f32 reference (Conv1d -> AdaptiveAvgPool1d(1) -> ReLU -> Linear -> Sigmoid).
    emb = jnp.concatenate([params["embedding"][tokens],
                           params["constant_embedding"][tokens]], axis=-1)
    feats = []
    for w, b, k in zip(params["conv_w"], params["conv_b"], kernel_sizes):
        L = T - k + 1
        windows = jnp.stack([emb[:, t:t + k, :] for t in range(L)], axis=1)  # (B,L,k,2E)
        conv = jnp.einsum("blkd,cdk->blc", windows, w) + b[None, None, :]    # (B,L,C)
        feats.append(jnp.maximum(conv.mean(axis=1), 0.0))
    enc = jnp.concatenate(feats, axis=1)
    ref = jax.nn.sigmoid(enc @ params["fc_w"].T + params["fc_b"])

    assert out.shape == (B, 1)
    # bf16 table/W_eff/output -> compare against the f32 reference with a
    # bf16-appropriate tolerance.
    assert jnp.allclose(out, ref, atol=2e-2, rtol=2e-2), (out, ref)
    print("KERNEL_OK")
</pallas_src>

<mosaic_0001>
module attributes {stable_mosaic.version = 11 : i64} {
  func.func @_textcnn_kernel(%arg0: i32, %arg1: i32, %arg2: memref<16x256xbf16, #tpu.memory_space<vmem>>, %arg3: memref<256x128xbf16, #tpu.memory_space<vmem>>, %arg4: memref<8x128xf32, #tpu.memory_space<vmem>>, %arg5: memref<16x128xbf16, #tpu.memory_space<vmem>>, %arg6: memref<16x128xf32, #tpu.memory_space<vmem>>) attributes {dimension_semantics = [#tpu.dimension_semantics<parallel>, #tpu.dimension_semantics<arbitrary>], iteration_bounds = array<i64: 1, 1>, scalar_prefetch = 0 : i64, scratch_operands = 1 : i64, tpu.core_type = #tpu.core_type<tc>, window_params = [{transform_indices = @transform_0, window_bounds = array<i64: 16, 256>}, {transform_indices = @transform_1, window_bounds = array<i64: 256, 128>}, {pipeline_mode = #tpu.pipeline_mode<synchronous>, transform_indices = @transform_2, window_bounds = array<i64: 8, 128>}, {transform_indices = @transform_3, window_bounds = array<i64: 16, 128>}]} {
    %c0_i32 = arith.constant 0 : i32
    %0 = arith.cmpi eq, %arg1, %c0_i32 : i32
    %1 = arith.extui %0 : i1 to i32
    %c0_i32_0 = arith.constant 0 : i32
    %2 = arith.cmpi ne, %1, %c0_i32_0 : i32
    scf.if %2 {
      %cst_10 = arith.constant 0.000000e+00 : f32
      %12 = vector.broadcast %cst_10 : f32 to vector<16x128xf32>
      %c0_11 = arith.constant 0 : index
      %c0_12 = arith.constant 0 : index
      %13 = vector.load %arg6[%c0_11, %c0_12] : memref<16x128xf32, #tpu.memory_space<vmem>>, vector<16x128xf32>
      tpu.vector_store %arg6[%c0_11, %c0_12], %12 {strides = array<i32>} : memref<16x128xf32, #tpu.memory_space<vmem>>, vector<16x128xf32>,
    } else {
    }
    %c0 = arith.constant 0 : index
    %c0_1 = arith.constant 0 : index
    %3 = vector.load %arg6[%c0, %c0_1] : memref<16x128xf32, #tpu.memory_space<vmem>>, vector<16x128xf32>
    %c0_2 = arith.constant 0 : index
    %c0_3 = arith.constant 0 : index
    %4 = vector.load %arg2[%c0_2, %c0_3] : memref<16x256xbf16, #tpu.memory_space<vmem>>, vector<16x256xbf16>
    %c0_4 = arith.constant 0 : index
    %c0_5 = arith.constant 0 : index
    %5 = vector.load %arg3[%c0_4, %c0_5] : memref<256x128xbf16, #tpu.memory_space<vmem>>, vector<256x128xbf16>
    %cst = arith.constant dense<0.000000e+00> : vector<16x128xf32>
    %6 = tpu.matmul %4, %5, %cst {dimension_numbers = #tpu.dot_dimension_numbers<[1], [0], [0], [1], [0, 0, 1, 1], [], []>} : vector<16x256xbf16>, vector<256x128xbf16>, vector<16x128xf32> -> vector<16x128xf32>
    %7 = arith.addf %3, %6 : vector<16x128xf32>
    %c0_6 = arith.constant 0 : index
    %c0_7 = arith.constant 0 : index
    %8 = vector.load %arg6[%c0_6, %c0_7] : memref<16x128xf32, #tpu.memory_space<vmem>>, vector<16x128xf32>
    tpu.vector_store %arg6[%c0_6, %c0_7], %7 {strides = array<i32>} : memref<16x128xf32, #tpu.memory_space<vmem>>, vector<16x128xf32>,
    %c0_i32_8 = arith.constant 0 : i32
    %9 = arith.cmpi eq, %arg1, %c0_i32_8 : i32
    %10 = arith.extui %9 : i1 to i32
    %c0_i32_9 = arith.constant 0 : i32
    %11 = arith.cmpi ne, %10, %c0_i32_9 : i32
    scf.if %11 {
      %c0_10 = arith.constant 0 : index
      %c0_11 = arith.constant 0 : index
      %12 = vector.load %arg6[%c0_10, %c0_11] : memref<16x128xf32, #tpu.memory_space<vmem>>, vector<16x128xf32>
      %c0_12 = arith.constant 0 : index
      %c0_13 = arith.constant 0 : index
      %13 = vector.load %arg4[%c0_12, %c0_13] : memref<8x128xf32, #tpu.memory_space<vmem>>, vector<1x128xf32>
      %14 = vector.broadcast %13 : vector<1x128xf32> to vector<16x128xf32>
      %15 = arith.addf %12, %14 : vector<16x128xf32>
      %cst_14 = arith.constant 0.000000e+00 : f32
      %16 = vector.broadcast %cst_14 : f32 to vector<16x128xf32>
      %17 = arith.maximumf %15, %16 : vector<16x128xf32>
      %c1 = arith.constant 1 : index
      %c0_15 = arith.constant 0 : index
      %18 = vector.load %arg4[%c1, %c0_15] : memref<8x128xf32, #tpu.memory_space<vmem>>, vector<1x128xf32>
      %19 = vector.broadcast %18 : vector<1x128xf32> to vector<16x128xf32>
      %20 = arith.mulf %17, %19 : vector<16x128xf32>
      %cst_16 = arith.constant dense<0.000000e+00> : vector<16xf32>
      %21 = vector.multi_reduction <add>, %20, %cst_16 [1] : vector<16x128xf32> to vector<16xf32>
      %22 = vector.shape_cast %21 : vector<16xf32> to vector<16x1xf32>
      %c2 = arith.constant 2 : index
      %c0_17 = arith.constant 0 : index
      %23 = vector.load %arg4[%c2, %c0_17] : memref<8x128xf32, #tpu.memory_space<vmem>>, vector<1x1xf32>
      %24 = vector.broadcast %23 : vector<1x1xf32> to vector<16x1xf32>
      %25 = arith.addf %22, %24 : vector<16x1xf32>
      %26 = arith.negf %25 : vector<16x1xf32>
      %27 = math.exp %26 : vector<16x1xf32>
      %cst_18 = arith.constant 1.000000e+00 : f32
      %28 = vector.broadcast %cst_18 : f32 to vector<16x1xf32>
      %29 = arith.addf %28, %27 : vector<16x1xf32>
      %30 = arith.divf %28, %29 : vector<16x1xf32>
      %31 = vector.shape_cast %30 : vector<16x1xf32> to vector<16x1xf32>
      %32 = vector.broadcast %31 : vector<16x1xf32> to vector<16x128xf32>
      %33 = arith.truncf %32 : vector<16x128xf32> to vector<16x128xbf16>
      %c0_19 = arith.constant 0 : index
      %c0_20 = arith.constant 0 : index
      %34 = vector.load %arg5[%c0_19, %c0_20] : memref<16x128xbf16, #tpu.memory_space<vmem>>, vector<16x128xbf16>
      tpu.vector_store %arg5[%c0_19, %c0_20], %33 {strides = array<i32>} : memref<16x128xbf16, #tpu.memory_space<vmem>>, vector<16x128xbf16>,
    } else {
    }
    return
  }
  func.func @transform_0(%arg0: i32, %arg1: i32) -> (i32, i32) {
    %c0_i32 = arith.constant 0 : i32
    return %arg0, %arg1 : i32, i32
  }
  func.func @transform_1(%arg0: i32, %arg1: i32) -> (i32, i32) {
    %c0_i32 = arith.constant 0 : i32
    %c0_i32_0 = arith.constant 0 : i32
    return %arg1, %c0_i32 : i32, i32
  }
  func.func @transform_2(%arg0: i32, %arg1: i32) -> (i32, i32) {
    %c0_i32 = arith.constant 0 : i32
    %c0_i32_0 = arith.constant 0 : i32
    %c0_i32_1 = arith.constant 0 : i32
    return %c0_i32, %c0_i32_0 : i32, i32
  }
  func.func @transform_3(%arg0: i32, %arg1: i32) -> (i32, i32) {
    %c0_i32 = arith.constant 0 : i32
    %c0_i32_0 = arith.constant 0 : i32
    return %arg0, %c0_i32 : i32, i32
  }
}

</mosaic_0001>

<llo_original>
// kernel: textcnn_forward.1
$region0: #{textcnn_forward.1}
  #allocation0 [shape = 'u32[]', space=smem, size = 0x4, offset = 0x4, fixed_abs, tag = 'smem constant byte address 0x4 - core index']
  #allocation1 [shape = 'u32[72,128]{1,0:T(1,128)}', space=vmem, size = 0x9000, scoped, tag = 'internal scratch']
  #allocation2 [shape = 'f32[16,128]{1,0:T(8,128)}', space=vmem, size = 0x2000, scoped, tag = 'scratch operand']
  %s0 = inlined_call_operand.vmem [shape: bf16[16,256], index: 0, kind: input, shape index: {}]
  %s1 = inlined_call_operand.vmem [shape: bf16[256,128], index: 1, kind: input, shape index: {}]
  %s2 = inlined_call_operand.vmem [shape: f32[8,128], index: 2, kind: input, shape index: {}]
  %s3 = inlined_call_operand.vmem [shape: bf16[16,128], index: 3, kind: output, shape index: {}]
  %s4 = sld [smem:[#allocation0]]
  $region30: #{textcnn_forward.1} parent=0
    _
  %s6 = ssub.s32 1, %s4
  %s7 = scalar_select 0, %s6, %s4
  // Predicated region
  $region2: #{textcnn_forward.1} parent=0 // pred_check
    _
  $region3: #{textcnn_forward.1} parent=0 // pred_check_branch
    %9 = sbr.rel (0) target = $region5
  $region4: #{textcnn_forward.1} parent=0 // pred_region
    _
  $region5: #{textcnn_forward.1} parent=0 // pred_fallthru
    _
  // Predicated region
  $region6: #{textcnn_forward.1} parent=0 // pred_check
    _
  $region7: #{textcnn_forward.1} parent=0 // pred_check_branch
    %11 = sbr.rel (0) target = $region9
  $region8: #{textcnn_forward.1} parent=0 // pred_region
    _
  $region9: #{textcnn_forward.1} parent=0 // pred_fallthru
    _
  // Predicated region
  $region10: #{textcnn_forward.1} parent=0 // pred_check
    _
  $region11: #{textcnn_forward.1} parent=0 // pred_check_branch
    %13 = sbr.rel (0) target = $region13
  $region12: #{textcnn_forward.1} parent=0 // pred_region
    _
  $region13: #{textcnn_forward.1} parent=0 // pred_fallthru
    _
  %p14 = scmp.eq.s32.totalorder 0, 0
  // Predicated region
  $region14: #{textcnn_forward.1} parent=0 // pred_check
    %p15 = pneg %p14
  $region15: #{textcnn_forward.1} parent=0 // pred_check_branch
    %17 = sbr.rel (%p15) target = $region17
  $region16: #{textcnn_forward.1} parent=0 // pred_region
    %18 = vst [vmem:[#allocation2] sm:$0xff] 0.0
    %19 = vst [vmem:[#allocation2 + $0x8] sm:$0xff] 0.0
  $region17: #{textcnn_forward.1} parent=0 // pred_fallthru
    _
  %v20 = vld [vmem:[#allocation2] sm:$0xff]
  %v21 = vld [vmem:[#allocation2 + $0x8] sm:$0xff]
  %v22 = vld [vmem:[%s0] sm:$0xff]
  %v23 = vld [vmem:[%s0 + $0x8] sm:$0xff]
  %v24 = vld [vmem:[%s1] sm:$0xf]
  %v25 = vld [vmem:[%s1 + $0x4] sm:$0xf]
  %v26 = vld [vmem:[%s1 + $0x8] sm:$0xf]
  %v27 = vld [vmem:[%s1 + $0xc] sm:$0xf]
  %v28 = vld [vmem:[%s1 + $0x10] sm:$0xf]
  %v29 = vld [vmem:[%s1 + $0x14] sm:$0xf]
  %v30 = vld [vmem:[%s1 + $0x18] sm:$0xf]
  %v31 = vld [vmem:[%s1 + $0x1c] sm:$0xf]
  %v32 = vld [vmem:[%s1 + $0x20] sm:$0xf]
  %v33 = vld [vmem:[%s1 + $0x24] sm:$0xf]
  %v34 = vld [vmem:[%s1 + $0x28] sm:$0xf]
  %v35 = vld [vmem:[%s1 + $0x2c] sm:$0xf]
  %v36 = vld [vmem:[%s1 + $0x30] sm:$0xf]
  %v37 = vld [vmem:[%s1 + $0x34] sm:$0xf]
  %v38 = vld [vmem:[%s1 + $0x38] sm:$0xf]
  %v39 = vld [vmem:[%s1 + $0x3c] sm:$0xf]
  %v40 = vld [vmem:[%s1 + $0x40] sm:$0xf]
  %v41 = vld [vmem:[%s1 + $0x44] sm:$0xf]
  %v42 = vld [vmem:[%s1 + $0x48] sm:$0xf]
  %v43 = vld [vmem:[%s1 + $0x4c] sm:$0xf]
  %v44 = vld [vmem:[%s1 + $0x50] sm:$0xf]
  %v45 = vld [vmem:[%s1 + $0x54] sm:$0xf]
  %v46 = vld [vmem:[%s1 + $0x58] sm:$0xf]
  %v47 = vld [vmem:[%s1 + $0x5c] sm:$0xf]
  %v48 = vld [vmem:[%s1 + $0x60] sm:$0xf]
  %v49 = vld [vmem:[%s1 + $0x64] sm:$0xf]
  %v50 = vld [vmem:[%s1 + $0x68] sm:$0xf]
  %v51 = vld [vmem:[%s1 + $0x6c] sm:$0xf]
  %v52 = vld [vmem:[%s1 + $0x70] sm:$0xf]
  %v53 = vld [vmem:[%s1 + $0x74] sm:$0xf]
  %v54 = vld [vmem:[%s1 + $0x78] sm:$0xf]
  %v55 = vld [vmem:[%s1 + $0x7c] sm:$0xf]
  %v58 = vunpack.c.l.b16 %v22
  %v59 = vunpack.c.h.b16 %v22
  %v60 = vunpack.c.l.b16 %v23
  %v61 = vunpack.c.h.b16 %v23
  %v62 = vpack.c.b16 %v60, %v58
  %v63 = vpack.c.b16 %v61, %v59
  %v98 = vunpack.c.l.b16 %v24
  %v99 = vunpack.c.l.b16 %v25
  %v100 = vunpack.c.l.b16 %v26
  %v101 = vunpack.c.l.b16 %v27
  %v102 = vunpack.c.l.b16 %v28
  %v103 = vunpack.c.l.b16 %v29
  %v104 = vunpack.c.l.b16 %v30
  %v105 = vunpack.c.l.b16 %v31
  %v106 = vunpack.c.l.b16 %v32
  %v107 = vunpack.c.l.b16 %v33
  %v108 = vunpack.c.l.b16 %v34
  %v109 = vunpack.c.l.b16 %v35
  %v110 = vunpack.c.l.b16 %v36
  %v111 = vunpack.c.l.b16 %v37
  %v112 = vunpack.c.l.b16 %v38
  %v113 = vunpack.c.l.b16 %v39
  %v114 = vunpack.c.l.b16 %v40
  %v115 = vunpack.c.l.b16 %v41
  %v116 = vunpack.c.l.b16 %v42
  %v117 = vunpack.c.l.b16 %v43
  %v118 = vunpack.c.l.b16 %v44
  %v119 = vunpack.c.l.b16 %v45
  %v120 = vunpack.c.l.b16 %v46
  %v121 = vunpack.c.l.b16 %v47
  %v122 = vunpack.c.l.b16 %v48
  %v123 = vunpack.c.l.b16 %v49
  %v124 = vunpack.c.l.b16 %v50
  %v125 = vunpack.c.l.b16 %v51
  %v126 = vunpack.c.l.b16 %v52
  %v127 = vunpack.c.l.b16 %v53
  %v128 = vunpack.c.l.b16 %v54
  %v129 = vunpack.c.l.b16 %v55
  %v130 = vpack.c.b16 %v99, %v98
  %v131 = vpack.c.b16 %v101, %v100
  %v132 = vpack.c.b16 %v103, %v102
  %v133 = vpack.c.b16 %v105, %v104
  %v134 = vpack.c.b16 %v107, %v106
  %v135 = vpack.c.b16 %v109, %v108
  %v136 = vpack.c.b16 %v111, %v110
  %v137 = vpack.c.b16 %v113, %v112
  %v138 = vpack.c.b16 %v115, %v114
  %v139 = vpack.c.b16 %v117, %v116
  %v140 = vpack.c.b16 %v119, %v118
  %v141 = vpack.c.b16 %v121, %v120
  %v142 = vpack.c.b16 %v123, %v122
  %v143 = vpack.c.b16 %v125, %v124
  %v144 = vpack.c.b16 %v127, %v126
  %v145 = vpack.c.b16 %v129, %v128
  %162 = vmatpush.bf16.msra.mxu0 %v137
  %163 = vmatpush.bf16.msra.mxu0 %v136
  %164 = vmatpush.bf16.msra.mxu0 %v135
  %165 = vmatpush.bf16.msra.mxu0 %v134
  %166 = vmatpush.bf16.msra.mxu0 %v133
  %167 = vmatpush.bf16.msra.mxu0 %v132
  %168 = vmatpush.bf16.msra.mxu0 %v131
  %169 = vmatpush.bf16.msra.mxu0 %v130
  %170 = vmatmul.bf16.gmra.mxu0 %v62
  %v171 = vpop.f32.mrf.mxu0
  %v172 = vadd.f32 0.0, %v171
  %v173 = vpop.f32.mrf.mxu0
  %v174 = vadd.f32 0.0, %v173
  %175 = vdwg.mxu0
  %176 = vmatpush.bf16.msra.mxu0 %v145
  %177 = vmatpush.bf16.msra.mxu0 %v144
  %178 = vmatpush.bf16.msra.mxu0 %v143
  %179 = vmatpush.bf16.msra.mxu0 %v142
  %180 = vmatpush.bf16.msra.mxu0 %v141
  %181 = vmatpush.bf16.msra.mxu0 %v140
  %182 = vmatpush.bf16.msra.mxu0 %v139
  %183 = vmatpush.bf16.msra.mxu0 %v138
  %184 = vmatmul.bf16.gmra.mxu0 %v63
  %v185 = vpop.f32.mrf.mxu0
  %v186 = vadd.f32 %v172, %v185
  %v187 = vpop.f32.mrf.mxu0
  %v188 = vadd.f32 %v174, %v187
  %189 = vdwg.mxu0
  %v190 = vadd.f32 %v20, %v186
  %v191 = vadd.f32 %v21, %v188
  %192 = vst [vmem:[#allocation2] sm:$0xff] %v190
  %193 = vst [vmem:[#allocation2 + $0x8] sm:$0xff] %v191
  // Predicated region
  $region18: #{textcnn_forward.1} parent=0 // pred_check
    %p194 = pneg %p14
  $region19: #{textcnn_forward.1} parent=0 // pred_check_branch
    %196 = sbr.rel (%p194) target = $region21
  $region20: #{textcnn_forward.1} parent=0 // pred_region
    %v197 = vld [vmem:[#allocation2] sm:$0xff]
    %v198 = vld [vmem:[#allocation2 + $0x8] sm:$0xff]
    %v199 = vld [vmem:[%s2] sm:$0x1]
    %v200 = vperm.slane %v199, 0
    %v201 = vadd.f32 %v197, %v200
    %v202 = vadd.f32 %v198, %v200
    %v203 = vmax.f32 %v201, 0.0
    %v204 = vmax.f32 %v202, 0.0
    %v205 = vld [vmem:[%s2 + $0x1] sm:$0x1]
    %v206 = vperm.slane %v205, 0
    %v207 = vmul.f32 %v203, %v206
    %v208 = vmul.f32 %v204, %v206
    %209 = vadd.xlane.f32.xlu0 %v207
    %v210 = vpop.xlane.xlu0 %209
    %211 = vadd.xlane.f32.xlu0 %v208
    %v212 = vpop.xlane.xlu0 %211
    %v213 = vld [vmem:[%s2 + $0x2] sm:$0x1]
    %v214 = vperm.slane %v213, 0
    %v215 = vadd.f32 %v210, %v214
    %v216 = vadd.f32 %v212, %v214
    %v217 = vxor.u32 %v215, 2147483648
    %v218 = vxor.u32 %v216, 2147483648
    %v219 = vmul.f32 %v217, 1.442695
    %v220 = vpow.pop %v219
    %v221 = vmul.f32 %v218, 1.442695
    %v222 = vpow.pop %v221
    %v223 = vadd.f32 %v220, 1.0
    %v224 = vadd.f32 %v222, 1.0
    %v225 = vrcp.pop %v223
    %v226 = vmul.f32 %v223, %v225
    %v227 = vsub.f32 1.0, %v226
    %v228 = vmul.f32 %v225, %v227
    %v229 = vadd.f32 %v225, %v228
    %vm230 = vweird.f32 %v223
    %vm231 = vweird.f32 %v225
    %vm232 = vmor %vm230, %vm231
    %v233 = vsel %vm232, %v225, %v229
    %v234 = vand.u32 2147483647, %v223
    %vm235 = vcmp.eq.f32.partialorder %v234, 8.507059e+37
    %v236 = vand.u32 %v223, 2147483648
    %v237 = vor.u32 1.1754944e-38, %v236
    %v238 = vsel %vm235, %v237, %v233
    %v239 = vmul.f32 1.0, %v238
    %v240 = vrcp.pop %v224
    %v241 = vmul.f32 %v224, %v240
    %v242 = vsub.f32 1.0, %v241
    %v243 = vmul.f32 %v240, %v242
    %v244 = vadd.f32 %v240, %v243
    %vm245 = vweird.f32 %v224
    %vm246 = vweird.f32 %v240
    %vm247 = vmor %vm245, %vm246
    %v248 = vsel %vm247, %v240, %v244
    %v249 = vand.u32 2147483647, %v224
    %vm250 = vcmp.eq.f32.partialorder %v249, 8.507059e+37
    %v251 = vand.u32 %v224, 2147483648
    %v252 = vor.u32 1.1754944e-38, %v251
    %v253 = vsel %vm250, %v252, %v248
    %v254 = vmul.f32 1.0, %v253
    %256 = vset.pattern.permute.xlu0 0
    %257 = vperm.xlu0 %256, %v239
    %v258 = vpop.permute.xlu0 %257
    %261 = vset.pattern.permute.xlu0 0
    %262 = vperm.xlu0 %261, %v254
    %v263 = vpop.permute.xlu0 %262
    %v265 = vpack.c.bf16 %v258, %v258
    %v266 = vpack.c.bf16 %v263, %v263
    %267 = vst [vmem:[%s3] sm:$0xf] %v265
    %268 = vst [vmem:[%s3 + $0x4] sm:$0xf] %v266
  $region21: #{textcnn_forward.1} parent=0 // pred_fallthru
    _
  // Predicated region
  $region22: #{textcnn_forward.1} parent=0 // pred_check
    _
  $region23: #{textcnn_forward.1} parent=0 // pred_check_branch
    %270 = sbr.rel (0) target = $region25
  $region24: #{textcnn_forward.1} parent=0 // pred_region
    _
  $region25: #{textcnn_forward.1} parent=0 // pred_fallthru
    _
  // Predicated region
  $region26: #{textcnn_forward.1} parent=0 // pred_check
    _
  $region27: #{textcnn_forward.1} parent=0 // pred_check_branch
    %272 = sbr.rel (0) target = $region29
  $region28: #{textcnn_forward.1} parent=0 // pred_region
    _
  $region29: #{textcnn_forward.1} parent=0 // pred_fallthru
    _

</llo_original>
